<compile_context>
chip_gen: v6e
topology: v6e:2x2x1
jax: 0.10.0
libtpu: 0.0.40
codegen_flags: <defaults>
</compile_context>

<pallas_src>
import functools

import jax
import jax.numpy as jnp
from jax.experimental import pallas as pl
from jax.experimental.pallas import tpu as pltpu


def _pool_kernel(x_ref, o_ref, sum_acc, max_acc, *, HW, THW):
    """Streams one (c_block, THW) spatial tile; accumulates per-channel sum & max."""
    k = pl.program_id(2)
    nk = pl.num_programs(2)

    @pl.when(k == 0)
    def _init():
        sum_acc[...] = jnp.zeros_like(sum_acc)
        max_acc[...] = jnp.full_like(max_acc, -jnp.inf)

    xb = x_ref[...]                                   # (c_block, THW), input dtype

    def accumulate(x_sum, x_max):
        # Sum accumulates in f32; max stays in the native dtype (exact) and only
        # the tiny (c_block, 1) reduced result is cast.
        sum_acc[...] += jnp.sum(x_sum.astype(jnp.float32), axis=-1, keepdims=True)
        max_acc[...] = jnp.maximum(
            max_acc[...],
            jnp.max(x_max, axis=-1, keepdims=True).astype(jnp.float32))

    if HW % THW != 0:
        # Only the single remainder tile pays the masking cost; every other grid
        # step runs the plain path below.  Only the last block along the HW axis
        # can contain Pallas-padded (undefined) lanes, so this gating is safe.
        @pl.when(k != nk - 1)
        def _full_tile():
            accumulate(xb, xb)

        @pl.when(k == nk - 1)
        def _masked_tile():
            col = jax.lax.broadcasted_iota(jnp.int32, (1, THW), 1) + k * THW
            valid = col < HW                          # (1, THW), broadcasts over rows
            x_sum = jnp.where(valid, xb, jnp.zeros((), xb.dtype))
            x_max = jnp.where(valid, xb, jnp.full((), -jnp.inf, xb.dtype))
            accumulate(x_sum, x_max)
    else:
        accumulate(xb, xb)

    @pl.when(k == nk - 1)
    def _finalize():
        avg = sum_acc[...] * (1.0 / HW)               # (c_block, 1)
        stats = jnp.concatenate([avg, max_acc[...]], axis=-1)   # (c_block, 2)
        o_ref[0] = stats.astype(o_ref.dtype)


@functools.partial(jax.jit, static_argnames=("max_tile_bytes",))
def channel_attention(x, w1, w2, *, max_tile_bytes=8 * 1024 * 1024):
    """x: [B, C, H, W]; w1: [C//16, C]; w2: [C, C//16] -> attention [B, C, 1, 1]."""
    B, C, H, W = x.shape
    HW = H * W
    x_flat = x.reshape(B, C, HW)
    itemsize = x.dtype.itemsize

    # ---- Tile sizing (generation-aware via an explicit VMEM budget) -------------
    # Channel block: tile C (multiple of 8) when C alone would force tiny spatial
    # tiles, so each DMA row stays lane-dense (>= ~1024 lanes or the full HW).
    c_block = C
    if C % 8 == 0:
        min_thw = min(1024, pl.cdiv(HW, 128) * 128)
        fit = max(8, (max_tile_bytes // (min_thw * itemsize)) // 8 * 8)
        c_block = min(C, fit)
        # Make sure there are >= 2 parallel grid points so both v7x TensorCores
        # have work even when B == 1.
        if B * pl.cdiv(C, c_block) < 2 and C % 16 == 0:
            c_block = min(c_block, C // 2)

    # Spatial tile: either the full HW (block == full dim, any HW allowed, no
    # masking), or a multiple of 128 that fits the budget (double-buffered).
    thw_budget = max(128, (max_tile_bytes // (c_block * itemsize)) // 128 * 128)
    thw = HW if thw_budget >= HW else thw_budget

    n_c = pl.cdiv(C, c_block)
    n_hw = pl.cdiv(HW, thw)

    # Default double-buffering: ~2 * tile in flight for the input stream, plus
    # tiny outputs / scratch.  Keep the scoped limit within every generation's
    # physical VMEM (v7x is only 64 MiB per TensorCore).
    tile_bytes = c_block * thw * itemsize
    vmem_limit = int(min(48 * 1024 * 1024,
                         max(32 * 1024 * 1024, 2 * tile_bytes + (8 << 20))))

    kernel = functools.partial(_pool_kernel, HW=HW, THW=thw)

    stats = pl.pallas_call(
        kernel,
        out_shape=jax.ShapeDtypeStruct((B, C, 2), jnp.float32),
        grid_spec=pltpu.PrefetchScalarGridSpec(
            num_scalar_prefetch=0,
            grid=(B, n_c, n_hw),                  # B, C-blocks parallel; HW reduction last
            in_specs=[
                pl.BlockSpec((pl.Squeezed(), c_block, thw),
                             lambda b, c, k: (b, c, k)),
            ],
            out_specs=pl.BlockSpec((1, c_block, 2), lambda b, c, k: (b, c, 0)),
            scratch_shapes=[
                pltpu.VMEM((c_block, 1), jnp.float32),   # running sum
                pltpu.VMEM((c_block, 1), jnp.float32),   # running max
            ],
        ),
        compiler_params=pltpu.CompilerParams(
            dimension_semantics=("parallel", "parallel", "arbitrary"),
            vmem_limit_bytes=vmem_limit),
        cost_estimate=pl.CostEstimate(
            flops=2 * B * C * HW,
            transcendentals=0,
            bytes_accessed=B * C * HW * itemsize + B * C * 2 * 4),
    )(x_flat)

    avg = stats[:, :, 0]                                   # (B, C)
    mx = stats[:, :, 1]                                    # (B, C)

    # Shared MLP (1x1 convs on 1x1 maps == dense matmuls) + sigmoid, batched over
    # both pooled stats at once; tiny, left to XLA (fused under the same jit).
    pooled = jnp.concatenate([avg, mx], axis=0)            # (2B, C)
    h = jnp.maximum(pooled @ w1.T, 0.0)                    # (2B, C//16)
    y = h @ w2.T                                           # (2B, C)
    out = jax.nn.sigmoid(y[:B] + y[B:])                    # (B, C)
    return out.reshape(B, C, 1, 1).astype(x.dtype)


def reference(x, w1, w2):
    # Pure-JAX reference mirroring the PyTorch forward.
    avg = jnp.mean(x, axis=(2, 3))                         # (B, C)
    mx = jnp.max(x, axis=(2, 3))                           # (B, C)

    def fc(v):
        h = jnp.maximum(v @ w1.T, 0.0)
        return h @ w2.T

    out = jax.nn.sigmoid(fc(avg) + fc(mx))
    return out[:, :, None, None]


if __name__ == "__main__":
    key = jax.random.PRNGKey(0)
    kx, k1, k2, kx2, kx3, k3, k4 = jax.random.split(key, 7)

    # ---- Config 1: single full-HW tile, no masking, no channel tiling ----------
    B, C, H, W = 2, 64, 16, 16     # in_planes=64 -> hidden = 64 // 16 = 4
    Cr = C // 16
    x = jax.random.normal(kx, (B, C, H, W), dtype=jnp.float32)
    w1 = jax.random.normal(k1, (Cr, C), dtype=jnp.float32) * (2.0 / C) ** 0.5
    w2 = jax.random.normal(k2, (C, Cr), dtype=jnp.float32) * (2.0 / Cr) ** 0.5

    out = jax.block_until_ready(channel_attention(x, w1, w2))
    ref = reference(x, w1, w2)
    assert out.shape == (B, C, 1, 1), out.shape
    assert jnp.allclose(out, ref, atol=1e-5, rtol=1e-5), \
        float(jnp.max(jnp.abs(out - ref)))

    # ---- Config 2: forced tiny budget -> channel tiling + multi-tile HW with a
    # masked remainder tile (exercises both the unmasked and masked paths) -------
    H2, W2 = 20, 20                # HW = 400 -> thw = 256, remainder tile of 144
    x2 = jax.random.normal(kx2, (B, C, H2, W2), dtype=jnp.float32)
    out2 = jax.block_until_ready(
        channel_attention(x2, w1, w2, max_tile_bytes=16 * 128 * 4))
    ref2 = reference(x2, w1, w2)
    assert jnp.allclose(out2, ref2, atol=1e-5, rtol=1e-5), \
        float(jnp.max(jnp.abs(out2 - ref2)))

    # ---- Config 3: B=1 -> forced channel split for megacore; block == full HW
    # with a non-multiple-of-128 spatial extent ----------------------------------
    B3, C3, H3, W3 = 1, 32, 9, 9
    Cr3 = C3 // 16
    x3 = jax.random.normal(kx3, (B3, C3, H3, W3), dtype=jnp.float32)
    w1_3 = jax.random.normal(k3, (Cr3, C3), dtype=jnp.float32) * (2.0 / C3) ** 0.5
    w2_3 = jax.random.normal(k4, (C3, Cr3), dtype=jnp.float32) * (2.0 / Cr3) ** 0.5
    out3 = jax.block_until_ready(channel_attention(x3, w1_3, w2_3))
    ref3 = reference(x3, w1_3, w2_3)
    assert jnp.allclose(out3, ref3, atol=1e-5, rtol=1e-5), \
        float(jnp.max(jnp.abs(out3 - ref3)))

    print("KERNEL_OK")
</pallas_src>

<mosaic_0001>
module attributes {stable_mosaic.version = 11 : i64} {
  func.func @_pool_kernel(%arg0: i32, %arg1: i32, %arg2: i32, %arg3: memref<1x64x256xf32, #tpu.memory_space<vmem>>, %arg4: memref<1x64x2xf32, #tpu.memory_space<vmem>>, %arg5: memref<64x1xf32, #tpu.memory_space<vmem>>, %arg6: memref<64x1xf32, #tpu.memory_space<vmem>>) attributes {dimension_semantics = [#tpu.dimension_semantics<parallel>, #tpu.dimension_semantics<parallel>, #tpu.dimension_semantics<arbitrary>], iteration_bounds = array<i64: 2, 1, 1>, scalar_prefetch = 0 : i64, scratch_operands = 2 : i64, tpu.core_type = #tpu.core_type<tc>, window_params = [{transform_indices = @transform_0, window_bounds = array<i64: 1, 64, 256>}, {transform_indices = @transform_1, window_bounds = array<i64: 1, 64, 2>}]} {
    %c0_i32 = arith.constant 0 : i32
    %0 = arith.cmpi eq, %arg2, %c0_i32 : i32
    %1 = arith.extui %0 : i1 to i32
    %c0_i32_0 = arith.constant 0 : i32
    %2 = arith.cmpi ne, %1, %c0_i32_0 : i32
    scf.if %2 {
      %cst_14 = arith.constant 0.000000e+00 : f32
      %18 = vector.broadcast %cst_14 : f32 to vector<64x1xf32>
      %c0_15 = arith.constant 0 : index
      %c0_16 = arith.constant 0 : index
      %19 = vector.load %arg5[%c0_15, %c0_16] : memref<64x1xf32, #tpu.memory_space<vmem>>, vector<64x1xf32>
      tpu.vector_store %arg5[%c0_15, %c0_16], %18 {strides = array<i32>} : memref<64x1xf32, #tpu.memory_space<vmem>>, vector<64x1xf32>,
      %cst_17 = arith.constant 0xFF800000 : f32
      %20 = vector.broadcast %cst_17 : f32 to vector<64x1xf32>
      %c0_18 = arith.constant 0 : index
      %c0_19 = arith.constant 0 : index
      %21 = vector.load %arg6[%c0_18, %c0_19] : memref<64x1xf32, #tpu.memory_space<vmem>>, vector<64x1xf32>
      tpu.vector_store %arg6[%c0_18, %c0_19], %20 {strides = array<i32>} : memref<64x1xf32, #tpu.memory_space<vmem>>, vector<64x1xf32>,
    } else {
    }
    %c0 = arith.constant 0 : index
    %c0_1 = arith.constant 0 : index
    %c0_2 = arith.constant 0 : index
    %3 = vector.load %arg3[%c0, %c0_1, %c0_2] : memref<1x64x256xf32, #tpu.memory_space<vmem>>, vector<1x64x256xf32>
    %4 = vector.shape_cast %3 : vector<1x64x256xf32> to vector<64x256xf32>
    %c0_3 = arith.constant 0 : index
    %c0_4 = arith.constant 0 : index
    %5 = vector.load %arg5[%c0_3, %c0_4] : memref<64x1xf32, #tpu.memory_space<vmem>>, vector<64x1xf32>
    %cst = arith.constant dense<0.000000e+00> : vector<64xf32>
    %6 = vector.multi_reduction <add>, %4, %cst [1] : vector<64x256xf32> to vector<64xf32>
    %7 = vector.shape_cast %6 : vector<64xf32> to vector<64x1xf32>
    %8 = arith.addf %5, %7 : vector<64x1xf32>
    %c0_5 = arith.constant 0 : index
    %c0_6 = arith.constant 0 : index
    %9 = vector.load %arg5[%c0_5, %c0_6] : memref<64x1xf32, #tpu.memory_space<vmem>>, vector<64x1xf32>
    tpu.vector_store %arg5[%c0_5, %c0_6], %8 {strides = array<i32>} : memref<64x1xf32, #tpu.memory_space<vmem>>, vector<64x1xf32>,
    %c0_7 = arith.constant 0 : index
    %c0_8 = arith.constant 0 : index
    %10 = vector.load %arg6[%c0_7, %c0_8] : memref<64x1xf32, #tpu.memory_space<vmem>>, vector<64x1xf32>
    %cst_9 = arith.constant dense<0xFF800000> : vector<64xf32>
    %11 = vector.multi_reduction <maximumf>, %4, %cst_9 [1] : vector<64x256xf32> to vector<64xf32>
    %12 = vector.shape_cast %11 : vector<64xf32> to vector<64x1xf32>
    %13 = arith.maximumf %10, %12 : vector<64x1xf32>
    %c0_10 = arith.constant 0 : index
    %c0_11 = arith.constant 0 : index
    %14 = vector.load %arg6[%c0_10, %c0_11] : memref<64x1xf32, #tpu.memory_space<vmem>>, vector<64x1xf32>
    tpu.vector_store %arg6[%c0_10, %c0_11], %13 {strides = array<i32>} : memref<64x1xf32, #tpu.memory_space<vmem>>, vector<64x1xf32>,
    %c0_i32_12 = arith.constant 0 : i32
    %15 = arith.cmpi eq, %arg2, %c0_i32_12 : i32
    %16 = arith.extui %15 : i1 to i32
    %c0_i32_13 = arith.constant 0 : i32
    %17 = arith.cmpi ne, %16, %c0_i32_13 : i32
    scf.if %17 {
      %c0_14 = arith.constant 0 : index
      %c0_15 = arith.constant 0 : index
      %18 = vector.load %arg5[%c0_14, %c0_15] : memref<64x1xf32, #tpu.memory_space<vmem>>, vector<64x1xf32>
      %cst_16 = arith.constant 3.906250e-03 : f32
      %19 = vector.broadcast %cst_16 : f32 to vector<64x1xf32>
      %20 = arith.mulf %18, %19 : vector<64x1xf32>
      %c0_17 = arith.constant 0 : index
      %c0_18 = arith.constant 0 : index
      %21 = vector.load %arg6[%c0_17, %c0_18] : memref<64x1xf32, #tpu.memory_space<vmem>>, vector<64x1xf32>
      %22 = tpu.concatenate %20, %21 in 1 : vector<64x1xf32>, vector<64x1xf32> -> vector<64x2xf32>
      %c0_19 = arith.constant 0 : index
      %c0_20 = arith.constant 0 : index
      %c0_21 = arith.constant 0 : index
      %23 = vector.load %arg4[%c0_19, %c0_20, %c0_21] : memref<1x64x2xf32, #tpu.memory_space<vmem>>, vector<1x64x2xf32>
      %24 = vector.shape_cast %23 : vector<1x64x2xf32> to vector<64x2xf32>
      %25 = vector.shape_cast %22 : vector<64x2xf32> to vector<1x64x2xf32>
      tpu.vector_store %arg4[%c0_19, %c0_20, %c0_21], %25 {strides = array<i32>} : memref<1x64x2xf32, #tpu.memory_space<vmem>>, vector<1x64x2xf32>,
    } else {
    }
    return
  }
  func.func @transform_0(%arg0: i32, %arg1: i32, %arg2: i32) -> (i32, i32, i32) {
    %c0_i32 = arith.constant 0 : i32
    return %arg0, %arg1, %arg2 : i32, i32, i32
  }
  func.func @transform_1(%arg0: i32, %arg1: i32, %arg2: i32) -> (i32, i32, i32) {
    %c0_i32 = arith.constant 0 : i32
    %c0_i32_0 = arith.constant 0 : i32
    return %arg0, %arg1, %c0_i32 : i32, i32, i32
  }
}

</mosaic_0001>

<llo_original>
// kernel: channel_attention.1
$region0: #{channel_attention.1}
  #allocation0 [shape = 'u32[]', space=smem, size = 0x4, offset = 0x4, fixed_abs, tag = 'smem constant byte address 0x4 - core index']
  #allocation1 [shape = 'u32[144,128]{1,0:T(1,128)}', space=vmem, size = 0x12000, scoped, tag = 'internal scratch']
  #allocation2 [shape = 'f32[64,1]{1,0:T(8,128)}', space=vmem, size = 0x8000, scoped, tag = 'scratch operand']
  #allocation3 [shape = 'f32[64,1]{1,0:T(8,128)}', space=vmem, size = 0x8000, scoped, tag = 'scratch operand']
  %s0 = inlined_call_operand.vmem [shape: f32[2,64,256], index: 0, kind: input, shape index: {}]
  %s1 = inlined_call_operand.vmem [shape: f32[2,64,2], index: 1, kind: output, shape index: {}]
  %s2 = sld [smem:[#allocation0]]
  $region45: #{channel_attention.1} parent=0
    _
  %s4 = ssub.s32 1, %s2
  %s5 = scalar_select 0, %s4, %s2
  loop: start=0, step=1, limit=4
  $region2: #{channel_attention.1} parent=0 // loop_pre_header
    _
  $region3: #{channel_attention.1} parent=0 // loop_header
    %s7 = sphi 0, %s11
    %p8 = scmp.ge.s32.totalorder %s7, 4
    %s14 = sphi 0, %s33
    %s15 = sphi 0, %s29
    %s16 = sphi 0, %s25
    %s17 = sphi 0, %s14
    %s18 = sphi 0, %s15
    %s19 = sphi 0, %s16
    %s20 = sphi 0, %s17
    %s21 = sphi 0, %s18
    %s22 = sphi 0, %s19
    %s40 = sphi 0, %s42
    %s43 = sphi 0, %s40
    %s44 = sphi 0, %s43
    %s60 = sphi 0, %s44
    %s68 = sphi 0, %s70
    %s71 = sphi 0, %s68
    %s72 = sphi 0, %s71
    %s88 = sphi 0, %s72
  $region4: #{channel_attention.1} parent=0 // loop_header_branch
    %10 = sbr.rel (%p8) target = $region8
  $region5: #{channel_attention.1} parent=0 // loop_body
    %s12 = ssub.s32 %s7, 1
    %s13 = ssub.s32 %s7, 2
    %s23 = sadd.s32 1, %s16
    %p24 = scmp.ge.s32.totalorder %s23, 1
    %s25 = scalar_select %p24, 0, %s23
    %s26 = sadd.s32 1, %s15
    %s27 = scalar_select %p24, %s26, %s15
    %p28 = scmp.ge.s32.totalorder %s27, 1
    %s29 = scalar_select %p28, 0, %s27
    %s30 = sadd.s32 1, %s14
    %s31 = scalar_select %p28, %s30, %s14
    %p32 = scmp.ge.s32.totalorder %s31, 2
    %s33 = scalar_select %p32, 0, %s31
    %s34 = ssub.s32 %s14, %s33
    %s35 = ssub.s32 %s15, %s29
    %s36 = sor.u32 %s34, %s35
    %s37 = ssub.s32 %s16, %s25
    %s38 = sor.u32 %s36, %s37
    %p39 = scmp.eq.s32.totalorder %s38, 0
    %s41 = sadd.s32 %s40, 1
    %s42 = scalar_select %p39, %s40, %s41
    %p45 = pneg %p39
    %p46 = scmp.eq.s32.totalorder %s7, 1
    %p47 = por %p45, %p46
    %p48 = scmp.ne.s32.totalorder %s40, %s43
    %p49 = scmp.eq.s32.totalorder %s7, 0
    %p50 = por %p48, %p49
    %p51 = scmp.ne.s32.totalorder %s40, %s43
    %p52 = scmp.eq.s32.totalorder %s12, 1
    %p53 = por %p51, %p52
    %p54 = scmp.ne.s32.totalorder %s43, %s44
    %p55 = scmp.eq.s32.totalorder %s12, 0
    %p56 = por %p54, %p55
    %p57 = scmp.ne.s32.totalorder %s43, %s44
    %p58 = scmp.eq.s32.totalorder %s13, 1
    %p59 = por %p57, %p58
    %p61 = scmp.ne.s32.totalorder %s44, %s60
    %p62 = scmp.eq.s32.totalorder %s13, 0
    %p63 = por %p61, %p62
    %s64 = ssub.s32 %s14, %s33
    %s65 = ssub.s32 %s15, %s29
    %s66 = sor.u32 %s64, %s65
    %p67 = scmp.eq.s32.totalorder %s66, 0
    %s69 = sadd.s32 %s68, 1
    %s70 = scalar_select %p67, %s68, %s69
    %p73 = pneg %p67
    %p74 = scmp.eq.s32.totalorder %s7, 1
    %p75 = por %p73, %p74
    %p76 = scmp.ne.s32.totalorder %s68, %s71
    %p77 = scmp.eq.s32.totalorder %s7, 0
    %p78 = por %p76, %p77
    %p79 = scmp.ne.s32.totalorder %s68, %s71
    %p80 = scmp.eq.s32.totalorder %s12, 1
    %p81 = por %p79, %p80
    %p82 = scmp.ne.s32.totalorder %s71, %s72
    %p83 = scmp.eq.s32.totalorder %s12, 0
    %p84 = por %p82, %p83
    %p85 = scmp.ne.s32.totalorder %s71, %s72
    %p86 = scmp.eq.s32.totalorder %s13, 1
    %p87 = por %p85, %p86
    %p89 = scmp.ne.s32.totalorder %s72, %s88
    %p90 = scmp.eq.s32.totalorder %s13, 0
    %p91 = por %p89, %p90
    %p92 = scmp.le.s32.totalorder 1, %s7
    %p93 = scmp.lt.s32.totalorder %s7, 3
    %p94 = pnand %p92, %p93
    %p95 = pneg %p94
    // Predicated region
    $region9: #{channel_attention.1} parent=5 // pred_check
      _
    $region10: #{channel_attention.1} parent=5 // pred_check_branch
      %97 = sbr.rel (%p94) target = $region12
    $region11: #{channel_attention.1} parent=5 // pred_region
      %s98 = ssub.s32 %s7, 1
    $region12: #{channel_attention.1} parent=5 // pred_fallthru
      _
    %p99 = scmp.lt.s32.totalorder %s7, 2
    // Predicated region
    $region13: #{channel_attention.1} parent=5 // pred_check
      %p100 = pneg %p99
    $region14: #{channel_attention.1} parent=5 // pred_check_branch
      %102 = sbr.rel (%p100) target = $region16
    $region15: #{channel_attention.1} parent=5 // pred_region
      // Predicated region
      $region17: #{channel_attention.1} parent=15 // pred_check
        %p103 = pneg %p50
      $region18: #{channel_attention.1} parent=15 // pred_check_branch
        %105 = sbr.rel (%p103) target = $region20
      $region19: #{channel_attention.1} parent=15 // pred_region
        %s106 = smul.u32 8, %s15
        %s107 = smul.u32 2, %s16
        %p108 = scmp.lt.s32.totalorder %s14, 1
        %s109 = scalar_select %p108, %s14, 1
        %p110 = scmp.lt.s32.totalorder %s106, 7
        %s111 = scalar_select %p110, %s106, 7
        %p112 = scmp.lt.s32.totalorder %s107, 1
        %s113 = scalar_select %p112, %s107, 1
        %s114 = smul.addr %s111, 2
        %s115 = sadd.s32 %s113, %s114
        %s116 = smul.addr %s109, 16
        %s117 = sadd.s32 %s115, %s116
        %s118 = smul.addr %s117, 8
        %s119 = scalar_lea.vmem %s0, %s118
        %s120 = smul.u32 8, %s15
        %s121 = smul.u32 2, %s16
      $region20: #{channel_attention.1} parent=15 // pred_fallthru
        _
    $region16: #{channel_attention.1} parent=5 // pred_fallthru
      _
    %p122 = scmp.le.s32.totalorder 1, %s7
    %p123 = scmp.lt.s32.totalorder %s7, 3
    %p124 = pnand %p122, %p123
    %p125 = pneg %p124
    // Predicated region
    $region21: #{channel_attention.1} parent=5 // pred_check
      _
    $region22: #{channel_attention.1} parent=5 // pred_check_branch
      %127 = sbr.rel (%p124) target = $region24
    $region23: #{channel_attention.1} parent=5 // pred_region
      %s128 = ssub.s32 %s7, 1
      %s129 = smul.u32 8, %s18
      %s130 = smul.u32 2, %s19
      %p131 = scmp.lt.s32.totalorder %s17, 1
      %s132 = scalar_select %p131, %s17, 1
      %p133 = scmp.lt.s32.totalorder %s129, 7
      %s134 = scalar_select %p133, %s129, 7
      %p135 = scmp.lt.s32.totalorder %s130, 1
      %s136 = scalar_select %p135, %s130, 1
      %s137 = smul.addr %s134, 2
      %s138 = sadd.s32 %s136, %s137
      %s139 = smul.addr %s132, 16
      %s140 = sadd.s32 %s138, %s139
      %s141 = smul.addr %s140, 8
      %s142 = scalar_lea.vmem %s0, %s141
      %p143 = pneg %p56
      %p144 = pneg %p53
      %p145 = pneg %p84
      %p146 = pneg %p81
      %s147 = smul.u32 8, %s18
      %p148 = scmp.lt.s32.totalorder %s17, 1
      %s149 = scalar_select %p148, %s17, 1
      %p150 = scmp.lt.s32.totalorder %s147, 7
      %s151 = scalar_select %p150, %s147, 7
      %s152 = smul.addr %s149, 8
      %s153 = sadd.s32 %s151, %s152
      %s154 = smul.addr %s153, 8
      %s155 = scalar_lea.vmem %s1, %s154
      %s156 = smul.u32 8, %s18
      %s157 = smul.u32 2, %s19
      %p158 = scmp.lt.s32.totalorder %s17, 1
      %s159 = scalar_select %p158, %s17, 1
      %p160 = scmp.lt.s32.totalorder %s156, 7
      %s161 = scalar_select %p160, %s156, 7
      %p162 = scmp.lt.s32.totalorder %s157, 1
      %s163 = scalar_select %p162, %s157, 1
      %s164 = smul.addr %s161, 2
      %s165 = sadd.s32 %s163, %s164
      %s166 = smul.addr %s159, 16
      %s167 = sadd.s32 %s165, %s166
      %s168 = smul.addr %s167, 8
      %s169 = scalar_lea.vmem %s0, %s168
      %s170 = smul.u32 8, %s18
      %s171 = smul.u32 2, %s19
      %s172 = smul.u32 8, %s18
      %p173 = scmp.lt.s32.totalorder %s17, 1
      %s174 = scalar_select %p173, %s17, 1
      %p175 = scmp.lt.s32.totalorder %s172, 7
      %s176 = scalar_select %p175, %s172, 7
      %s177 = smul.addr %s174, 8
      %s178 = sadd.s32 %s176, %s177
      %s179 = smul.addr %s178, 8
      %s180 = scalar_lea.vmem %s1, %s179
      %s181 = smul.u32 8, %s18
      %p182 = scmp.eq.s32.totalorder %s19, 0
      // Predicated region
      $region25: #{channel_attention.1} parent=23 // pred_check
        %p183 = pneg %p182
      $region26: #{channel_attention.1} parent=23 // pred_check_branch
        %185 = sbr.rel (%p183) target = $region28
      $region27: #{channel_attention.1} parent=23 // pred_region
        %vm186 = vcmask 7168
        %187 = vst.msk [vmem:[#allocation2] sm:$0xff] %vm186, 0.0
        %188 = vst.msk [vmem:[#allocation2 + $0x8] sm:$0xff] %vm186, 0.0
        %189 = vst.msk [vmem:[#allocation2 + $0x10] sm:$0xff] %vm186, 0.0
        %190 = vst.msk [vmem:[#allocation2 + $0x18] sm:$0xff] %vm186, 0.0
        %191 = vst.msk [vmem:[#allocation2 + $0x20] sm:$0xff] %vm186, 0.0
        %192 = vst.msk [vmem:[#allocation2 + $0x28] sm:$0xff] %vm186, 0.0
        %193 = vst.msk [vmem:[#allocation2 + $0x30] sm:$0xff] %vm186, 0.0
        %194 = vst.msk [vmem:[#allocation2 + $0x38] sm:$0xff] %vm186, 0.0
        %195 = vst.msk [vmem:[#allocation3] sm:$0xff] %vm186, -inf
        %196 = vst.msk [vmem:[#allocation3 + $0x8] sm:$0xff] %vm186, -inf
        %197 = vst.msk [vmem:[#allocation3 + $0x10] sm:$0xff] %vm186, -inf
        %198 = vst.msk [vmem:[#allocation3 + $0x18] sm:$0xff] %vm186, -inf
        %199 = vst.msk [vmem:[#allocation3 + $0x20] sm:$0xff] %vm186, -inf
        %200 = vst.msk [vmem:[#allocation3 + $0x28] sm:$0xff] %vm186, -inf
        %201 = vst.msk [vmem:[#allocation3 + $0x30] sm:$0xff] %vm186, -inf
        %202 = vst.msk [vmem:[#allocation3 + $0x38] sm:$0xff] %vm186, -inf
      $region28: #{channel_attention.1} parent=23 // pred_fallthru
        _
      %v203 = vld [vmem:[%s169] sm:$0xff]
      %v204 = vld [vmem:[%s169 + $0x8] sm:$0xff]
      %v205 = vld [vmem:[%s169 + $0x10] sm:$0xff]
      %v206 = vld [vmem:[%s169 + $0x18] sm:$0xff]
      %v207 = vld [vmem:[%s169 + $0x20] sm:$0xff]
      %v208 = vld [vmem:[%s169 + $0x28] sm:$0xff]
      %v209 = vld [vmem:[%s169 + $0x30] sm:$0xff]
      %v210 = vld [vmem:[%s169 + $0x38] sm:$0xff]
      %v211 = vld [vmem:[%s169 + $0x40] sm:$0xff]
      %v212 = vld [vmem:[%s169 + $0x48] sm:$0xff]
      %v213 = vld [vmem:[%s169 + $0x50] sm:$0xff]
      %v214 = vld [vmem:[%s169 + $0x58] sm:$0xff]
      %v215 = vld [vmem:[%s169 + $0x60] sm:$0xff]
      %v216 = vld [vmem:[%s169 + $0x68] sm:$0xff]
      %v217 = vld [vmem:[%s169 + $0x70] sm:$0xff]
      %v218 = vld [vmem:[%s169 + $0x78] sm:$0xff]
      %v219 = vld [vmem:[#allocation2] sm:$0xff]
      %v220 = vld [vmem:[#allocation2 + $0x8] sm:$0xff]
      %v221 = vld [vmem:[#allocation2 + $0x10] sm:$0xff]
      %v222 = vld [vmem:[#allocation2 + $0x18] sm:$0xff]
      %v223 = vld [vmem:[#allocation2 + $0x20] sm:$0xff]
      %v224 = vld [vmem:[#allocation2 + $0x28] sm:$0xff]
      %v225 = vld [vmem:[#allocation2 + $0x30] sm:$0xff]
      %v226 = vld [vmem:[#allocation2 + $0x38] sm:$0xff]
      %v227 = vadd.f32 %v203, %v204
      %228 = vadd.xlane.f32.xlu0 %v227
      %v229 = vpop.xlane.xlu0 %228
      %v230 = vadd.f32 %v205, %v206
      %231 = vadd.xlane.f32.xlu0 %v230
      %v232 = vpop.xlane.xlu0 %231
      %v233 = vadd.f32 %v207, %v208
      %234 = vadd.xlane.f32.xlu0 %v233
      %v235 = vpop.xlane.xlu0 %234
      %v236 = vadd.f32 %v209, %v210
      %237 = vadd.xlane.f32.xlu0 %v236
      %v238 = vpop.xlane.xlu0 %237
      %v239 = vadd.f32 %v211, %v212
      %240 = vadd.xlane.f32.xlu0 %v239
      %v241 = vpop.xlane.xlu0 %240
      %v242 = vadd.f32 %v213, %v214
      %243 = vadd.xlane.f32.xlu0 %v242
      %v244 = vpop.xlane.xlu0 %243
      %v245 = vadd.f32 %v215, %v216
      %246 = vadd.xlane.f32.xlu0 %v245
      %v247 = vpop.xlane.xlu0 %246
      %v248 = vadd.f32 %v217, %v218
      %249 = vadd.xlane.f32.xlu0 %v248
      %v250 = vpop.xlane.xlu0 %249
      %v251 = vadd.f32 %v219, %v229
      %v252 = vadd.f32 %v220, %v232
      %v253 = vadd.f32 %v221, %v235
      %v254 = vadd.f32 %v222, %v238
      %v255 = vadd.f32 %v223, %v241
      %v256 = vadd.f32 %v224, %v244
      %v257 = vadd.f32 %v225, %v247
      %v258 = vadd.f32 %v226, %v250
      %vm259 = vcmask 7168
      %260 = vst.msk [vmem:[#allocation2] sm:$0xff] %vm259, %v251
      %261 = vst.msk [vmem:[#allocation2 + $0x8] sm:$0xff] %vm259, %v252
      %262 = vst.msk [vmem:[#allocation2 + $0x10] sm:$0xff] %vm259, %v253
      %263 = vst.msk [vmem:[#allocation2 + $0x18] sm:$0xff] %vm259, %v254
      %264 = vst.msk [vmem:[#allocation2 + $0x20] sm:$0xff] %vm259, %v255
      %265 = vst.msk [vmem:[#allocation2 + $0x28] sm:$0xff] %vm259, %v256
      %266 = vst.msk [vmem:[#allocation2 + $0x30] sm:$0xff] %vm259, %v257
      %267 = vst.msk [vmem:[#allocation2 + $0x38] sm:$0xff] %vm259, %v258
      %v268 = vld [vmem:[#allocation3] sm:$0xff]
      %v269 = vld [vmem:[#allocation3 + $0x8] sm:$0xff]
      %v270 = vld [vmem:[#allocation3 + $0x10] sm:$0xff]
      %v271 = vld [vmem:[#allocation3 + $0x18] sm:$0xff]
      %v272 = vld [vmem:[#allocation3 + $0x20] sm:$0xff]
      %v273 = vld [vmem:[#allocation3 + $0x28] sm:$0xff]
      %v274 = vld [vmem:[#allocation3 + $0x30] sm:$0xff]
      %v275 = vld [vmem:[#allocation3 + $0x38] sm:$0xff]
      %v276 = vmax.f32 %v203, %v204
      %277 = vmax.xlane.f32.xlu0 %v276
      %v278 = vpop.xlane.xlu0 %277
      %v279 = vmax.f32 %v205, %v206
      %280 = vmax.xlane.f32.xlu0 %v279
      %v281 = vpop.xlane.xlu0 %280
      %v282 = vmax.f32 %v207, %v208
      %283 = vmax.xlane.f32.xlu0 %v282
      %v284 = vpop.xlane.xlu0 %283
      %v285 = vmax.f32 %v209, %v210
      %286 = vmax.xlane.f32.xlu0 %v285
      %v287 = vpop.xlane.xlu0 %286
      %v288 = vmax.f32 %v211, %v212
      %289 = vmax.xlane.f32.xlu0 %v288
      %v290 = vpop.xlane.xlu0 %289
      %v291 = vmax.f32 %v213, %v214
      %292 = vmax.xlane.f32.xlu0 %v291
      %v293 = vpop.xlane.xlu0 %292
      %v294 = vmax.f32 %v215, %v216
      %295 = vmax.xlane.f32.xlu0 %v294
      %v296 = vpop.xlane.xlu0 %295
      %v297 = vmax.f32 %v217, %v218
      %298 = vmax.xlane.f32.xlu0 %v297
      %v299 = vpop.xlane.xlu0 %298
      %v300 = vmax.f32 %v268, %v278
      %v301 = vmax.f32 %v269, %v281
      %v302 = vmax.f32 %v270, %v284
      %v303 = vmax.f32 %v271, %v287
      %v304 = vmax.f32 %v272, %v290
      %v305 = vmax.f32 %v273, %v293
      %v306 = vmax.f32 %v274, %v296
      %v307 = vmax.f32 %v275, %v299
      %308 = vst.msk [vmem:[#allocation3] sm:$0xff] %vm259, %v300
      %309 = vst.msk [vmem:[#allocation3 + $0x8] sm:$0xff] %vm259, %v301
      %310 = vst.msk [vmem:[#allocation3 + $0x10] sm:$0xff] %vm259, %v302
      %311 = vst.msk [vmem:[#allocation3 + $0x18] sm:$0xff] %vm259, %v303
      %312 = vst.msk [vmem:[#allocation3 + $0x20] sm:$0xff] %vm259, %v304
      %313 = vst.msk [vmem:[#allocation3 + $0x28] sm:$0xff] %vm259, %v305
      %314 = vst.msk [vmem:[#allocation3 + $0x30] sm:$0xff] %vm259, %v306
      %315 = vst.msk [vmem:[#allocation3 + $0x38] sm:$0xff] %vm259, %v307
      // Predicated region
      $region29: #{channel_attention.1} parent=23 // pred_check
        %p316 = pneg %p182
      $region30: #{channel_attention.1} parent=23 // pred_check_branch
        %318 = sbr.rel (%p316) target = $region32
      $region31: #{channel_attention.1} parent=23 // pred_region
        %v319 = vld [vmem:[#allocation2] sm:$0xff]
        %v320 = vld [vmem:[#allocation2 + $0x8] sm:$0xff]
        %v321 = vld [vmem:[#allocation2 + $0x10] sm:$0xff]
        %v322 = vld [vmem:[#allocation2 + $0x18] sm:$0xff]
        %v323 = vld [vmem:[#allocation2 + $0x20] sm:$0xff]
        %v324 = vld [vmem:[#allocation2 + $0x28] sm:$0xff]
        %v325 = vld [vmem:[#allocation2 + $0x30] sm:$0xff]
        %v326 = vld [vmem:[#allocation2 + $0x38] sm:$0xff]
        %v327 = vmul.f32 %v319, 0.00390625
        %v328 = vmul.f32 %v320, 0.00390625
        %v329 = vmul.f32 %v321, 0.00390625
        %v330 = vmul.f32 %v322, 0.00390625
        %v331 = vmul.f32 %v323, 0.00390625
        %v332 = vmul.f32 %v324, 0.00390625
        %v333 = vmul.f32 %v325, 0.00390625
        %v334 = vmul.f32 %v326, 0.00390625
        %v335 = vld [vmem:[#allocation3] sm:$0xff]
        %v336 = vld [vmem:[#allocation3 + $0x8] sm:$0xff]
        %v337 = vld [vmem:[#allocation3 + $0x10] sm:$0xff]
        %v338 = vld [vmem:[#allocation3 + $0x18] sm:$0xff]
        %v339 = vld [vmem:[#allocation3 + $0x20] sm:$0xff]
        %v340 = vld [vmem:[#allocation3 + $0x28] sm:$0xff]
        %v341 = vld [vmem:[#allocation3 + $0x30] sm:$0xff]
        %v342 = vld [vmem:[#allocation3 + $0x38] sm:$0xff]
        %351 = vrot.lane.b32.xlu0 %v335, 1
        %v352 = vpop.permute.xlu0 %351
        %353 = vrot.lane.b32.xlu0 %v336, 1
        %v354 = vpop.permute.xlu0 %353
        %355 = vrot.lane.b32.xlu0 %v337, 1
        %v356 = vpop.permute.xlu0 %355
        %357 = vrot.lane.b32.xlu0 %v338, 1
        %v358 = vpop.permute.xlu0 %357
        %359 = vrot.lane.b32.xlu0 %v339, 1
        %v360 = vpop.permute.xlu0 %359
        %361 = vrot.lane.b32.xlu0 %v340, 1
        %v362 = vpop.permute.xlu0 %361
        %363 = vrot.lane.b32.xlu0 %v341, 1
        %v364 = vpop.permute.xlu0 %363
        %365 = vrot.lane.b32.xlu0 %v342, 1
        %v366 = vpop.permute.xlu0 %365
        %v375 = vsel %vm259, %v327, %v352
        %v376 = vsel %vm259, %v328, %v354
        %v377 = vsel %vm259, %v329, %v356
        %v378 = vsel %vm259, %v330, %v358
        %v379 = vsel %vm259, %v331, %v360
        %v380 = vsel %vm259, %v332, %v362
        %v381 = vsel %vm259, %v333, %v364
        %v382 = vsel %vm259, %v334, %v366
        %vm383 = vcmask 15360
        %384 = vst.msk [vmem:[%s180] sm:$0xff] %vm383, %v375
        %385 = vst.msk [vmem:[%s180 + $0x8] sm:$0xff] %vm383, %v376
        %386 = vst.msk [vmem:[%s180 + $0x10] sm:$0xff] %vm383, %v377
        %387 = vst.msk [vmem:[%s180 + $0x18] sm:$0xff] %vm383, %v378
        %388 = vst.msk [vmem:[%s180 + $0x20] sm:$0xff] %vm383, %v379
        %389 = vst.msk [vmem:[%s180 + $0x28] sm:$0xff] %vm383, %v380
        %390 = vst.msk [vmem:[%s180 + $0x30] sm:$0xff] %vm383, %v381
        %391 = vst.msk [vmem:[%s180 + $0x38] sm:$0xff] %vm383, %v382
      $region32: #{channel_attention.1} parent=23 // pred_fallthru
        _
      %s392 = smul.u32 8, %s18
      %p393 = scmp.lt.s32.totalorder %s17, 1
      %s394 = scalar_select %p393, %s17, 1
      %p395 = scmp.lt.s32.totalorder %s392, 7
      %s396 = scalar_select %p395, %s392, 7
      %s397 = smul.addr %s394, 8
      %s398 = sadd.s32 %s396, %s397
      %s399 = smul.addr %s398, 8
      %s400 = scalar_lea.vmem %s1, %s399
      // Predicated region
      $region33: #{channel_attention.1} parent=23 // pred_check
        %p401 = pneg %p81
      $region34: #{channel_attention.1} parent=23 // pred_check_branch
        %403 = sbr.rel (%p401) target = $region36
      $region35: #{channel_attention.1} parent=23 // pred_region
        %s404 = smul.u32 8, %s18
      $region36: #{channel_attention.1} parent=23 // pred_fallthru
        _
    $region24: #{channel_attention.1} parent=5 // pred_fallthru
      _
    %p405 = scmp.le.s32.totalorder 2, %s7
    // Predicated region
    $region37: #{channel_attention.1} parent=5 // pred_check
      %p406 = pneg %p405
    $region38: #{channel_attention.1} parent=5 // pred_check_branch
      %408 = sbr.rel (%p406) target = $region40
    $region39: #{channel_attention.1} parent=5 // pred_region
      %s409 = ssub.s32 %s7, 2
      // Predicated region
      $region41: #{channel_attention.1} parent=39 // pred_check
        %p410 = pneg %p87
      $region42: #{channel_attention.1} parent=39 // pred_check_branch
        %412 = sbr.rel (%p410) target = $region44
      $region43: #{channel_attention.1} parent=39 // pred_region
        %s413 = smul.u32 8, %s21
        %p414 = scmp.lt.s32.totalorder %s20, 1
        %s415 = scalar_select %p414, %s20, 1
        %p416 = scmp.lt.s32.totalorder %s413, 7
        %s417 = scalar_select %p416, %s413, 7
        %s418 = smul.addr %s415, 8
        %s419 = sadd.s32 %s417, %s418
        %s420 = smul.addr %s419, 8
        %s421 = scalar_lea.vmem %s1, %s420
      $region44: #{channel_attention.1} parent=39 // pred_fallthru
        _
    $region40: #{channel_attention.1} parent=5 // pred_fallthru
      _
  $region6: #{channel_attention.1} parent=0 // loop_footer
    %s11 = sadd.s32 1, %s7
  $region7: #{channel_attention.1} parent=0 // loop_footer_branch
    %6 = sbr.rel target = $region3
  $region8: #{channel_attention.1} parent=0 // loop_exit
    _

</llo_original>
